<compile_context>
chip_gen: v7x
topology: tpu7x:2x2x1
jax: 0.10.0
libtpu: 0.0.40
codegen_flags: <defaults>
</compile_context>

<pallas_src>
import numpy as np
import jax
import jax.numpy as jnp
from jax.experimental import pallas as pl
from jax.experimental.pallas import tpu as pltpu

LANE = 128        # TPU lane width (last dim)
SUBLANE = 8       # f32 sublane count (second-to-last dim)
NEG_INF = -1e30   # "no edge" sentinel (finite so exp/softmax stays NaN-free)


# ----------------------------------------------------------------------------
# small helpers
# ----------------------------------------------------------------------------

def _rup(n, m):
    return ((n + m - 1) // m) * m


def _row_tile(n, max_tile=128):
    """Return (padded_rows, row_tile) with row_tile | padded_rows."""
    if n <= max_tile:
        p = _rup(n, SUBLANE)
        return p, p
    p = _rup(n, max_tile)
    return p, max_tile


def _pad2(a, rows, cols, value=0):
    return jnp.pad(a, ((0, rows - a.shape[0]), (0, cols - a.shape[1])),
                   constant_values=value)


def _pad1(a, n, value=0):
    return jnp.pad(a, (0, n - a.shape[0]), constant_values=value)


def _mosaic_params(*dims):
    cp = getattr(pltpu, "CompilerParams", None) or getattr(pltpu, "TPUCompilerParams")
    return cp(dimension_semantics=tuple(dims))


# ----------------------------------------------------------------------------
# Pallas kernels
# ----------------------------------------------------------------------------

def _linear_kernel(x_ref, w_ref, b_ref, o_ref):
    o_ref[...] = jnp.dot(x_ref[...], w_ref[...],
                         preferred_element_type=jnp.float32) + b_ref[...]


def linear(x, w, b, tm):
    """y = x @ w + b, gridded over row tiles of size tm (tm | x.shape[0])."""
    m, k = x.shape
    n = w.shape[1]
    return pl.pallas_call(
        _linear_kernel,
        grid_spec=pltpu.PrefetchScalarGridSpec(
            num_scalar_prefetch=0,
            grid=(m // tm,),
            in_specs=[pl.BlockSpec((tm, k), lambda i: (i, 0)),
                      pl.BlockSpec((k, n), lambda i: (0, 0)),
                      pl.BlockSpec((1, n), lambda i: (0, 0))],
            out_specs=pl.BlockSpec((tm, n), lambda i: (i, 0))),
        out_shape=jax.ShapeDtypeStruct((m, n), jnp.float32),
        compiler_params=_mosaic_params("parallel"),
    )(x, w, b.reshape(1, -1))


def _edge_score_kernel(xr_ref, xl_ref, attr_ref, we_ref, att_ref, o_ref):
    """GATv2 per-edge attention logit.

    xr   : [TE, C]  lin_r(x)[tgt_e]      (target-side transform, gathered)
    xl   : [TE, C]  lin_l(x)[src_e]      (source-side transform, gathered)
    attr : [TE, Fe] raw edge attributes (incl. self loops)
    we   : [Fe, C]  lin_edge weight (no bias in GATv2Conv)
    att  : [C, 1]   attention vector
    out  : [TE, 1]  score_e = att . leaky_relu(xr + xl + attr @ we)
    """
    z = xr_ref[...] + xl_ref[...] + jnp.dot(attr_ref[...], we_ref[...],
                                            preferred_element_type=jnp.float32)
    z = jnp.where(z >= 0.0, z, jnp.float32(0.2) * z)           # leaky_relu(0.2)
    # att contraction on the MXU instead of a VPU multiply + XLU reduce
    o_ref[...] = jnp.dot(z, att_ref[...], preferred_element_type=jnp.float32)


def edge_scores(xr_t, xl_s, attr, w_e, att_col, te):
    ep, c = xr_t.shape
    fe = attr.shape[1]
    return pl.pallas_call(
        _edge_score_kernel,
        grid_spec=pltpu.PrefetchScalarGridSpec(
            num_scalar_prefetch=0,
            grid=(ep // te,),
            in_specs=[pl.BlockSpec((te, c), lambda i: (i, 0)),
                      pl.BlockSpec((te, c), lambda i: (i, 0)),
                      pl.BlockSpec((te, fe), lambda i: (i, 0)),
                      pl.BlockSpec((fe, c), lambda i: (0, 0)),
                      pl.BlockSpec((c, 1), lambda i: (0, 0))],
            out_specs=pl.BlockSpec((te, 1), lambda i: (i, 0))),
        out_shape=jax.ShapeDtypeStruct((ep, 1), jnp.float32),
        compiler_params=_mosaic_params("parallel"),
    )(xr_t, xl_s, attr, w_e, att_col)


def _attn_bn_gelu_res_kernel(s_ref, xl_ref, h_ref, scale_ref, shift_ref, o_ref,
                             m_sc, l_sc, acc_sc):
    """Online-softmax attention aggregation + fused BN/GELU/residual epilogue.

    Grid: (target tiles [parallel], source tiles [arbitrary]).
    s     : [TQ, TK]  attention logits (non-edges = -1e30)
    xl    : [TK, C]   lin_l(x) for this source tile (the messages)
    h     : [TQ, C]   residual input
    scale : [1, C]    gamma / sqrt(var + eps)
    shift : [1, C]    scale*conv_bias + beta - scale*mean
    out   : [TQ, C]   h + gelu(scale * softmax(s) @ xl + shift)
    """
    k = pl.program_id(1)

    @pl.when(k == 0)
    def _():
        m_sc[...] = jnp.full_like(m_sc, -jnp.inf)
        l_sc[...] = jnp.zeros_like(l_sc)
        acc_sc[...] = jnp.zeros_like(acc_sc)

    s = s_ref[...]
    m_prev = m_sc[...]
    m_new = jnp.maximum(m_prev, jnp.max(s, axis=-1, keepdims=True))
    corr = jnp.exp(m_prev - m_new)
    p = jnp.exp(s - m_new)
    l_sc[...] = corr * l_sc[...] + jnp.sum(p, axis=-1, keepdims=True)
    acc_sc[...] = corr * acc_sc[...] + jnp.dot(p, xl_ref[...],
                                               preferred_element_type=jnp.float32)
    m_sc[...] = m_new

    @pl.when(k == pl.num_programs(1) - 1)
    def _():
        x_conv = acc_sc[...] * pl.reciprocal(l_sc[...], approx=True)
        hb = x_conv * scale_ref[...] + shift_ref[...]
        # exact (erf) GELU on the EUP, matching torch.nn.functional.gelu default
        g = 0.5 * hb * (1.0 + jax.lax.erf(hb * jnp.float32(0.7071067811865476)))
        o_ref[...] = h_ref[...] + g            # residual_connection == 'res'


def attention_bn_gelu_res(scores, xl, h, scale, shift, tn):
    n, c = xl.shape
    nt = n // tn
    return pl.pallas_call(
        _attn_bn_gelu_res_kernel,
        grid_spec=pltpu.PrefetchScalarGridSpec(
            num_scalar_prefetch=0,
            grid=(nt, nt),
            in_specs=[pl.BlockSpec((tn, tn), lambda i, k: (i, k)),
                      pl.BlockSpec((tn, c), lambda i, k: (k, 0)),
                      pl.BlockSpec((tn, c), lambda i, k: (i, 0)),
                      pl.BlockSpec((1, c), lambda i, k: (0, 0)),
                      pl.BlockSpec((1, c), lambda i, k: (0, 0))],
            out_specs=pl.BlockSpec((tn, c), lambda i, k: (i, 0)),
            scratch_shapes=[pltpu.VMEM((tn, 1), jnp.float32),
                            pltpu.VMEM((tn, 1), jnp.float32),
                            pltpu.VMEM((tn, c), jnp.float32)]),
        out_shape=jax.ShapeDtypeStruct((n, c), jnp.float32),
        compiler_params=_mosaic_params("parallel", "arbitrary"),
    )(scores, xl, h, scale.reshape(1, -1), shift.reshape(1, -1))


def _linear_pool_kernel(pool_ref, h_ref, w_ref, b_ref, o_ref):
    t = jnp.dot(h_ref[...], w_ref[...], preferred_element_type=jnp.float32) + b_ref[...]
    o_ref[...] = jnp.dot(pool_ref[...], t, preferred_element_type=jnp.float32)


def linear_pool(pool, h, w, b):
    """Fused output Linear + global mean pool:  pool @ (h @ w + b)."""
    g = pool.shape[0]
    dout = w.shape[1]
    return pl.pallas_call(
        _linear_pool_kernel,
        out_shape=jax.ShapeDtypeStruct((g, dout), jnp.float32),
    )(pool, h, w, b.reshape(1, -1))


# ----------------------------------------------------------------------------
# Parameter initialization (deterministic, synthetic)
# ----------------------------------------------------------------------------

def _glorot(key, shape):
    fan_in, fan_out = shape
    limit = np.sqrt(6.0 / (fan_in + fan_out))
    return jax.random.uniform(key, shape, jnp.float32, -limit, limit)


def init_params(key, input_dim, node_embedding_dim, hidden_dim, output_dim,
                n_conv_layers, num_edge_features):
    assert node_embedding_dim == hidden_dim, "'res' residual requires equal dims"
    keys = iter(jax.random.split(key, 8 + 8 * n_conv_layers))
    params = {
        "emb_w": _glorot(next(keys), (input_dim, node_embedding_dim)),
        "emb_b": jnp.zeros((node_embedding_dim,), jnp.float32),
        "convs": [],
    }
    in_dim = node_embedding_dim
    for _ in range(n_conv_layers):
        layer = {
            "lin_l_w": _glorot(next(keys), (in_dim, hidden_dim)),
            "lin_l_b": jnp.zeros((hidden_dim,), jnp.float32),
            "lin_r_w": _glorot(next(keys), (in_dim, hidden_dim)),
            "lin_r_b": jnp.zeros((hidden_dim,), jnp.float32),
            "lin_edge_w": _glorot(next(keys), (num_edge_features, hidden_dim)),
            "att": _glorot(next(keys), (1, hidden_dim)).reshape(hidden_dim),
            "conv_bias": jnp.zeros((hidden_dim,), jnp.float32),
            # BatchNorm (inference-mode running statistics)
            "bn_gamma": jnp.ones((hidden_dim,), jnp.float32),
            "bn_beta": jnp.zeros((hidden_dim,), jnp.float32),
            "bn_mean": 0.1 * jax.random.normal(next(keys), (hidden_dim,), jnp.float32),
            "bn_var": 1.0 + 0.1 * jax.random.uniform(next(keys), (hidden_dim,),
                                                     jnp.float32),
        }
        params["convs"].append(layer)
        in_dim = hidden_dim
    params["out_w"] = _glorot(next(keys), (in_dim, output_dim))
    params["out_b"] = jnp.zeros((output_dim,), jnp.float32)
    return params


# ----------------------------------------------------------------------------
# Forward pass (eval mode: dropout = identity, BatchNorm uses running stats)
# ----------------------------------------------------------------------------

def gat_encoder_forward(params, x, edge_index, edge_attr, batch, num_graphs):
    n_nodes, f_in = x.shape
    n_edges, f_e = edge_attr.shape
    c = params["emb_w"].shape[1]           # node_embedding_dim == hidden_dim
    d_out = params["out_w"].shape[1]

    # padded sizes: features to 128 lanes, rows to sublane/tile multiples
    cp = _rup(c, LANE)
    f_in_p = _rup(f_in, LANE)
    f_e_p = _rup(f_e, LANE)
    d_out_p = _rup(d_out, LANE)
    n_p, tn = _row_tile(n_nodes)
    g_p = _rup(num_graphs, SUBLANE)

    src, tgt = edge_index[0], edge_index[1]

    # --- add self loops with fill_value='mean' (scatter-mean of incoming attrs)
    deg = jnp.zeros((n_nodes,), jnp.float32).at[tgt].add(1.0)
    attr_sum = jnp.zeros((n_nodes, f_e), jnp.float32).at[tgt].add(edge_attr)
    loop_attr = attr_sum / jnp.maximum(deg, 1.0)[:, None]
    loop_idx = jnp.arange(n_nodes, dtype=src.dtype)
    src_full = jnp.concatenate([src, loop_idx])
    tgt_full = jnp.concatenate([tgt, loop_idx])
    attr_full = jnp.concatenate([edge_attr, loop_attr], axis=0)
    e_tot = n_edges + n_nodes
    e_p, te = _row_tile(e_tot)

    attr_p = _pad2(attr_full, e_p, f_e_p)
    src_p = _pad1(src_full, e_p)
    tgt_p = _pad1(tgt_full, e_p)

    # --- node embedding (gridded GEMM, lane-dense padded weights)
    x_p = _pad2(x, n_p, f_in_p)
    emb_w = _pad2(params["emb_w"], f_in_p, cp)
    emb_b = _pad1(params["emb_b"], cp)
    h = linear(x_p, emb_w, emb_b, tn)                      # [n_p, cp]

    for layer in params["convs"]:
        # fused lin_l | lin_r GEMM -> [n_p, 2*cp]
        w_lr = jnp.concatenate([_pad2(layer["lin_l_w"], cp, cp),
                                _pad2(layer["lin_r_w"], cp, cp)], axis=1)
        b_lr = jnp.concatenate([_pad1(layer["lin_l_b"], cp),
                                _pad1(layer["lin_r_b"], cp)], axis=0)
        xlr = linear(h, w_lr, b_lr, tn)
        xl, xr = xlr[:, :cp], xlr[:, cp:]

        # per-edge GATv2 logits (no dense [N,N,C] tensor anywhere)
        xl_src = jnp.take(xl, src_p, axis=0)               # [e_p, cp]
        xr_tgt = jnp.take(xr, tgt_p, axis=0)               # [e_p, cp]
        w_e = _pad2(layer["lin_edge_w"], f_e_p, cp)
        att = _pad1(layer["att"], cp).reshape(cp, 1)
        s_edge = edge_scores(xr_tgt, xl_src, attr_p, w_e, att, te)   # [e_p, 1]

        # densify logits only: [n_p, n_p] with -1e30 for non-edges (mask folded in)
        scores = jnp.full((n_p, n_p), NEG_INF, jnp.float32).at[
            tgt_full, src_full].set(s_edge[:e_tot, 0])

        # fold conv bias + BatchNorm into per-channel scale/shift
        gamma = _pad1(layer["bn_gamma"], cp)
        beta = _pad1(layer["bn_beta"], cp)
        mean = _pad1(layer["bn_mean"], cp)
        var = _pad1(layer["bn_var"], cp, value=1.0)
        scale = gamma * jax.lax.rsqrt(var + jnp.float32(1e-5))
        shift = scale * _pad1(layer["conv_bias"], cp) + beta - mean * scale

        # online-softmax aggregation + BN/GELU/residual epilogue, one kernel
        h = attention_bn_gelu_res(scores, xl, h, scale, shift, tn)

    # --- fused output linear + global mean pool
    out_w = _pad2(params["out_w"], cp, d_out_p)
    out_b = _pad1(params["out_b"], d_out_p)
    batch_p = _pad1(batch, n_p, value=num_graphs)          # padded nodes -> dummy graph
    onehot = (batch_p[None, :] == jnp.arange(g_p)[:, None]).astype(jnp.float32)
    counts = jnp.maximum(onehot.sum(axis=1, keepdims=True), 1.0)
    pool = onehot / counts                                 # [g_p, n_p]
    out = linear_pool(pool, h, out_w, out_b)               # [g_p, d_out_p]
    return out[:num_graphs, :d_out]


# ----------------------------------------------------------------------------
# Example
# ----------------------------------------------------------------------------

if __name__ == "__main__":
    INPUT_DIM = 8
    NODE_EMBEDDING_DIM = 32
    HIDDEN_DIM = 32          # == NODE_EMBEDDING_DIM so 'res' residual is valid
    OUTPUT_DIM = 16
    N_CONV_LAYERS = 2
    NUM_EDGE_FEATURES = 4
    NODES_PER_GRAPH = 8
    NUM_GRAPHS = 2
    N_NODES = NODES_PER_GRAPH * NUM_GRAPHS

    key = jax.random.PRNGKey(0)
    k_params, k_x, k_e = jax.random.split(key, 3)

    params = init_params(k_params, INPUT_DIM, NODE_EMBEDDING_DIM, HIDDEN_DIM,
                         OUTPUT_DIM, N_CONV_LAYERS, NUM_EDGE_FEATURES)

    # node features
    x = jax.random.normal(k_x, (N_NODES, INPUT_DIM), jnp.float32)

    # bidirectional chain edges within each graph (no self loops in the data)
    src_list, tgt_list = [], []
    for g in range(NUM_GRAPHS):
        base = g * NODES_PER_GRAPH
        for i in range(NODES_PER_GRAPH - 1):
            src_list += [base + i, base + i + 1]
            tgt_list += [base + i + 1, base + i]
    edge_index = jnp.array([src_list, tgt_list], dtype=jnp.int32)
    num_edges = edge_index.shape[1]
    edge_attr = jax.random.normal(k_e, (num_edges, NUM_EDGE_FEATURES), jnp.float32)

    batch = jnp.repeat(jnp.arange(NUM_GRAPHS, dtype=jnp.int32), NODES_PER_GRAPH)

    out = gat_encoder_forward(params, x, edge_index, edge_attr, batch, NUM_GRAPHS)
    out = jax.block_until_ready(out)
    assert out.shape == (NUM_GRAPHS, OUTPUT_DIM)
    assert bool(jnp.all(jnp.isfinite(out)))
    print("KERNEL_OK")
</pallas_src>

<mosaic_0001>
module attributes {stable_mosaic.version = 11 : i64} {
  func.func @_linear_kernel(%arg0: i32, %arg1: memref<16x128xf32, #tpu.memory_space<vmem>>, %arg2: memref<128x128xf32, #tpu.memory_space<vmem>>, %arg3: memref<1x128xf32, #tpu.memory_space<vmem>>, %arg4: memref<16x128xf32, #tpu.memory_space<vmem>>) attributes {dimension_semantics = [#tpu.dimension_semantics<parallel>], iteration_bounds = array<i64: 1>, scalar_prefetch = 0 : i64, scratch_operands = 0 : i64, tpu.core_type = #tpu.core_type<tc>, window_params = [{transform_indices = @transform_0, window_bounds = array<i64: 16, 128>}, {pipeline_mode = #tpu.pipeline_mode<synchronous>, transform_indices = @transform_1, window_bounds = array<i64: 128, 128>}, {pipeline_mode = #tpu.pipeline_mode<synchronous>, transform_indices = @transform_2, window_bounds = array<i64: 1, 128>}, {transform_indices = @transform_3, window_bounds = array<i64: 16, 128>}]} {
    %c0 = arith.constant 0 : index
    %c0_0 = arith.constant 0 : index
    %0 = vector.load %arg1[%c0, %c0_0] : memref<16x128xf32, #tpu.memory_space<vmem>>, vector<16x128xf32>
    %c0_1 = arith.constant 0 : index
    %c0_2 = arith.constant 0 : index
    %1 = vector.load %arg2[%c0_1, %c0_2] : memref<128x128xf32, #tpu.memory_space<vmem>>, vector<128x128xf32>
    %cst = arith.constant dense<0.000000e+00> : vector<16x128xf32>
    %2 = tpu.matmul %0, %1, %cst {dimension_numbers = #tpu.dot_dimension_numbers<[1], [0], [0], [1], [0, 0, 1, 1], [], []>} : vector<16x128xf32>, vector<128x128xf32>, vector<16x128xf32> -> vector<16x128xf32>
    %c0_3 = arith.constant 0 : index
    %c0_4 = arith.constant 0 : index
    %3 = vector.load %arg3[%c0_3, %c0_4] : memref<1x128xf32, #tpu.memory_space<vmem>>, vector<1x128xf32>
    %4 = vector.broadcast %3 : vector<1x128xf32> to vector<16x128xf32>
    %5 = arith.addf %2, %4 : vector<16x128xf32>
    %c0_5 = arith.constant 0 : index
    %c0_6 = arith.constant 0 : index
    %6 = vector.load %arg4[%c0_5, %c0_6] : memref<16x128xf32, #tpu.memory_space<vmem>>, vector<16x128xf32>
    tpu.vector_store %arg4[%c0_5, %c0_6], %5 {strides = array<i32>} : memref<16x128xf32, #tpu.memory_space<vmem>>, vector<16x128xf32>,
    return
  }
  func.func @transform_0(%arg0: i32) -> (i32, i32) {
    %c0_i32 = arith.constant 0 : i32
    %c0_i32_0 = arith.constant 0 : i32
    return %arg0, %c0_i32 : i32, i32
  }
  func.func @transform_1(%arg0: i32) -> (i32, i32) {
    %c0_i32 = arith.constant 0 : i32
    %c0_i32_0 = arith.constant 0 : i32
    %c0_i32_1 = arith.constant 0 : i32
    return %c0_i32, %c0_i32_0 : i32, i32
  }
  func.func @transform_2(%arg0: i32) -> (i32, i32) {
    %c0_i32 = arith.constant 0 : i32
    %c0_i32_0 = arith.constant 0 : i32
    %c0_i32_1 = arith.constant 0 : i32
    return %c0_i32, %c0_i32_0 : i32, i32
  }
  func.func @transform_3(%arg0: i32) -> (i32, i32) {
    %c0_i32 = arith.constant 0 : i32
    %c0_i32_0 = arith.constant 0 : i32
    return %arg0, %c0_i32 : i32, i32
  }
}

</mosaic_0001>

<llo_original>
// kernel: tpu_custom_call.1
$region0: #{tpu_custom_call.1}
  #allocation0 [shape = 'u32[]', space=smem, size = 0x4, offset = 0x4, fixed_abs, tag = 'smem constant byte address 0x4 - core index']
  #allocation1 [shape = 'u32[144,128]{1,0:T(1,128)}', space=vmem, size = 0x12000, scoped, tag = 'internal scratch']
  %s0 = inlined_call_operand.hbm [shape: f32[16,128], index: 0, kind: input, shape index: {}]
  %s1 = inlined_call_operand.hbm [shape: f32[128,128], index: 1, kind: input, shape index: {}]
  %s2 = inlined_call_operand.vmem [shape: f32[1,128], index: 2, kind: input, shape index: {}]
  %s3 = inlined_call_operand.hbm [shape: f32[16,128], index: 3, kind: output, shape index: {}]
  %s4 = sld [smem:[#allocation0]]
  $region30: #{tpu_custom_call.1} parent=0
    _
  %s6 = ssub.s32 1, %s4
  %s7 = scalar_select 0, %s6, %s4
  $region1: #{tpu_custom_call.1} parent=0
    #allocation2 [shape = 'u8[8192]{0}', space=vmem, size = 0x2000, scoped, tag = 'input window, operand 0, single buffered']
    #allocation3 [shape = 's32[1]{0}', space=sflag, size = 0x4, scoped, tag = 'scoped memory for tpu_custom_call.1']
    #allocation4 [shape = 's32[1]{0}', space=sflag, size = 0x4, scoped, tag = 'scoped memory for tpu_custom_call.1']
    #allocation5 [shape = 'u8[65536]{0}', space=vmem, size = 0x10000, scoped, tag = 'input window, operand 1, single buffered']
    #allocation6 [shape = 's32[1]{0}', space=sflag, size = 0x4, scoped, tag = 'scoped memory for tpu_custom_call.1']
    #allocation7 [shape = 'u8[8192]{0}', space=vmem, size = 0x2000, scoped, tag = 'output window, operand 0, single buffered']
    %8 = vsyncpa [#allocation3], 0
    %9 = vsyncpa [#allocation6], 0
    %10 = vsyncpa [#allocation4], 0
    // Predicated region
    $region2: #{tpu_custom_call.1} parent=1 // pred_check
      _
    $region3: #{tpu_custom_call.1} parent=1 // pred_check_branch
      %12 = sbr.rel (0) target = $region5
    $region4: #{tpu_custom_call.1} parent=1 // pred_region
      %s14 = ssub.s32 256, 256
      %15 = vsyncadd [#allocation3], %s14
      %s16 = sshll.u32 [#allocation2], 4
      %s17 = int_to_ptr.vmem [resolvable:$true] %s16
      %22 = dma.hbm_to_vmem [thread:$0]  %s0, 256, %s17, [#allocation3], 128, 128, 8
    $region5: #{tpu_custom_call.1} parent=1 // pred_fallthru
      _
    // Predicated region
    $region6: #{tpu_custom_call.1} parent=1 // pred_check
      _
    $region7: #{tpu_custom_call.1} parent=1 // pred_check_branch
      %24 = sbr.rel (0) target = $region9
    $region8: #{tpu_custom_call.1} parent=1 // pred_region
      %s26 = ssub.s32 2048, 2048
      %27 = vsyncadd [#allocation6], %s26
      %s28 = sshll.u32 [#allocation5], 4
      %s29 = int_to_ptr.vmem [resolvable:$true] %s28
      %34 = dma.hbm_to_vmem [thread:$0]  %s1, 2048, %s29, [#allocation6], 128, 128, 8
    $region9: #{tpu_custom_call.1} parent=1 // pred_fallthru
      _
    // Predicated region
    $region10: #{tpu_custom_call.1} parent=1 // pred_check
      _
    $region11: #{tpu_custom_call.1} parent=1 // pred_check_branch
      %36 = sbr.rel (0) target = $region13
    $region12: #{tpu_custom_call.1} parent=1 // pred_region
      _
    $region13: #{tpu_custom_call.1} parent=1 // pred_fallthru
      _
    // Predicated region
    $region14: #{tpu_custom_call.1} parent=1 // pred_check
      _
    $region15: #{tpu_custom_call.1} parent=1 // pred_check_branch
      %38 = sbr.rel (0) target = $region17
    $region16: #{tpu_custom_call.1} parent=1 // pred_region
      %39 = dma.done [#allocation3], 256
    $region17: #{tpu_custom_call.1} parent=1 // pred_fallthru
      _
    // Predicated region
    $region18: #{tpu_custom_call.1} parent=1 // pred_check
      _
    $region19: #{tpu_custom_call.1} parent=1 // pred_check_branch
      %41 = sbr.rel (0) target = $region21
    $region20: #{tpu_custom_call.1} parent=1 // pred_region
      %42 = dma.done [#allocation6], 2048
    $region21: #{tpu_custom_call.1} parent=1 // pred_fallthru
      _
    %v43 = vld [vmem:[#allocation2] sm:$0xff]
    %v44 = vld [vmem:[#allocation2 + $0x8] sm:$0xff]
    %v45 = vld [vmem:[#allocation5] sm:$0xff]
    %v46 = vld [vmem:[#allocation5 + $0x8] sm:$0xff]
    %v47 = vld [vmem:[#allocation5 + $0x10] sm:$0xff]
    %v48 = vld [vmem:[#allocation5 + $0x18] sm:$0xff]
    %v49 = vld [vmem:[#allocation5 + $0x20] sm:$0xff]
    %v50 = vld [vmem:[#allocation5 + $0x28] sm:$0xff]
    %v51 = vld [vmem:[#allocation5 + $0x30] sm:$0xff]
    %v52 = vld [vmem:[#allocation5 + $0x38] sm:$0xff]
    %v53 = vld [vmem:[#allocation5 + $0x40] sm:$0xff]
    %v54 = vld [vmem:[#allocation5 + $0x48] sm:$0xff]
    %v55 = vld [vmem:[#allocation5 + $0x50] sm:$0xff]
    %v56 = vld [vmem:[#allocation5 + $0x58] sm:$0xff]
    %v57 = vld [vmem:[#allocation5 + $0x60] sm:$0xff]
    %v58 = vld [vmem:[#allocation5 + $0x68] sm:$0xff]
    %v59 = vld [vmem:[#allocation5 + $0x70] sm:$0xff]
    %v60 = vld [vmem:[#allocation5 + $0x78] sm:$0xff]
    %v61 = vld [vmem:[%s2] sm:$0x1]
    %v63 = vlaneseq
    %v64 = vshrl.u32 %v63, 7
    %v65 = vsub.s32 0, %v64
    %v66 = vrot.slane %v61, %v65
    %68 = vmatprep.subr.mxu0 0.0
    %69 = vmatpush1.msra.mxu0 %v45
    %70 = vmatprep.subr.mxu0 0.0
    %71 = vmatpush1.msra.mxu0 %v46
    %72 = vmatprep.subr.mxu0 0.0
    %73 = vmatpush1.msra.mxu0 %v47
    %74 = vmatprep.subr.mxu0 0.0
    %75 = vmatpush1.msra.mxu0 %v48
    %76 = vmatprep.subr.mxu0 0.0
    %77 = vmatpush1.msra.mxu0 %v49
    %78 = vmatprep.subr.mxu0 0.0
    %79 = vmatpush1.msra.mxu0 %v50
    %80 = vmatprep.subr.mxu0 0.0
    %81 = vmatpush1.msra.mxu0 %v51
    %82 = vmatprep.subr.mxu0 0.0
    %83 = vmatpush1.msra.mxu0 %v52
    %84 = vmatprep.subr.mxu0 0.0
    %85 = vmatpush1.msra.mxu0 %v53
    %86 = vmatprep.subr.mxu0 0.0
    %87 = vmatpush1.msra.mxu0 %v54
    %88 = vmatprep.subr.mxu0 0.0
    %89 = vmatpush1.msra.mxu0 %v55
    %90 = vmatprep.subr.mxu0 0.0
    %91 = vmatpush1.msra.mxu0 %v56
    %92 = vmatprep.subr.mxu0 0.0
    %93 = vmatpush1.msra.mxu0 %v57
    %94 = vmatprep.subr.mxu0 0.0
    %95 = vmatpush1.msra.mxu0 %v58
    %96 = vmatprep.subr.mxu0 0.0
    %97 = vmatpush1.msra.mxu0 %v59
    %98 = vmatprep.subr.mxu0 0.0
    %99 = vmatpush1.msra.mxu0 %v60
    %100 = vmatprep.subr.mxu0 0.0
    %101 = vmatpush1.msra.mxu0 0.0
    %102 = vmatprep.subr.mxu0 0.0
    %103 = vmatpush1.msra.mxu0 0.0
    %104 = vmatprep.subr.mxu0 0.0
    %105 = vmatpush1.msra.mxu0 0.0
    %106 = vmatprep.subr.mxu0 0.0
    %107 = vmatpush1.msra.mxu0 0.0
    %108 = vmatprep.subr.mxu0 0.0
    %109 = vmatpush1.msra.mxu0 0.0
    %110 = vmatprep.subr.mxu0 0.0
    %111 = vmatpush1.msra.mxu0 0.0
    %112 = vmatprep.subr.mxu0 0.0
    %113 = vmatpush1.msra.mxu0 0.0
    %114 = vmatprep.subr.mxu0 0.0
    %115 = vmatpush1.msra.mxu0 0.0
    %116 = vmatprep.subr.mxu0 0.0
    %117 = vmatpush1.msra.mxu0 0.0
    %118 = vmatprep.subr.mxu0 0.0
    %119 = vmatpush1.msra.mxu0 0.0
    %120 = vmatprep.subr.mxu0 0.0
    %121 = vmatpush1.msra.mxu0 0.0
    %122 = vmatprep.subr.mxu0 0.0
    %123 = vmatpush1.msra.mxu0 0.0
    %124 = vmatprep.subr.mxu0 0.0
    %125 = vmatpush1.msra.mxu0 0.0
    %126 = vmatprep.subr.mxu0 0.0
    %127 = vmatpush1.msra.mxu0 0.0
    %128 = vmatprep.subr.mxu0 0.0
    %129 = vmatpush1.msra.mxu0 0.0
    %130 = vmatprep.subr.mxu0 0.0
    %131 = vmatpush1.msra.mxu0 0.0
    %132 = vmatprep.mubr.f32.mxu0 0.0
    %133 = vmatmul.mubr.f32.gmra.mrb[0].mxu0 %v43
    %v134 = vpop.f32.mrb[0].mxu0
    %v135 = vadd.f32 %v66, %v134
    %v136 = vpop.f32.mrb[0].mxu0
    %137 = vmatprep.mubr.f32.mxu0 0.0
    %138 = vmatmul.mubr.f32.gmra.mrb[0].mxu0 %v44
    %v139 = vpop.f32.mrb[0].mxu0
    %v140 = vadd.f32 %v66, %v139
    %v141 = vpop.f32.mrb[0].mxu0
    %142 = vdwg.mxu0
    %143 = vst [vmem:[#allocation7] sm:$0xff] %v135
    %144 = vst [vmem:[#allocation7 + $0x8] sm:$0xff] %v140
    // Predicated region
    $region22: #{tpu_custom_call.1} parent=1 // pred_check
      _
    $region23: #{tpu_custom_call.1} parent=1 // pred_check_branch
      %146 = sbr.rel (0) target = $region25
    $region24: #{tpu_custom_call.1} parent=1 // pred_region
      %s148 = ssub.s32 256, 256
      %149 = vsyncadd [#allocation4], %s148
      %s150 = sshll.u32 [#allocation7], 4
      %s151 = int_to_ptr.vmem [resolvable:$true] %s150
      %156 = dma.vmem_to_hbm [thread:$0]  %s151, 256, %s3, [#allocation4], 128, 128, 8
    $region25: #{tpu_custom_call.1} parent=1 // pred_fallthru
      _
    // Predicated region
    $region26: #{tpu_custom_call.1} parent=1 // pred_check
      _
    $region27: #{tpu_custom_call.1} parent=1 // pred_check_branch
      %158 = sbr.rel (0) target = $region29
    $region28: #{tpu_custom_call.1} parent=1 // pred_region
      %159 = dma.done [#allocation4], 256
    $region29: #{tpu_custom_call.1} parent=1 // pred_fallthru
      _
    %160 = vsyncpa [#allocation3], 1
    %161 = vsyncpa [#allocation6], 1
    %162 = vsyncpa [#allocation4], 1

</llo_original>
